<compile_context>
chip_gen: v5e
topology: v5e:2x2
jax: 0.10.0
libtpu: 0.0.40
codegen_flags: <defaults>
</compile_context>

<pallas_src>
import functools

import jax
import jax.numpy as jnp
from jax.experimental import pallas as pl
from jax.experimental.pallas import tpu as pltpu

BN_EPS = 1e-5


def film_layer_kernel(
    cells_ref, cpds_ref,
    w1_ref, b1_ref,        # fused FiLM generator layer 1: (emb, 2*hid_e), (1, 2*hid_e)
    w2g_ref, b2g_ref,      # gamma head, row-stacked [w2g; 0]: (2*hid_e, in), (1, in)
    w2b3_ref,              # beta head folded through w3, [0; w2b @ w3]: (2*hid_e, hid_l)
    w3_ref, b3_ref,        # linear_block Linear(in, in//2); b3 already holds + b2b @ w3
    w4_ref, b4_ref,        # linear_block Linear(in//2, out); eval BN folded in
    out_ref,
    *, compute_dtype,
):
    f32 = jnp.float32
    cells = cells_ref[...].astype(f32)             # FiLM modulation stays f32 on the VPU
    cpds = cpds_ref[...].astype(compute_dtype)

    # FiLM generator layer 1, gamma+beta branches in one dot: h = [relu(hg) | relu(hb)]
    h = jnp.dot(cpds, w1_ref[...], preferred_element_type=f32) + b1_ref[...]
    h = jnp.maximum(h, 0.0).astype(compute_dtype)  # ReLU; Dropout = identity (eval)

    # gamma = hg @ w2g + b2g, computed on full-width h against [w2g; 0]
    # (avoids a sub-vreg lane slice of h at lane offset hid_e).
    gamma = jnp.dot(h, w2g_ref[...], preferred_element_type=f32) + b2g_ref[...]

    # FiLM modulation + first linear_block Linear; the beta branch is folded through w3:
    #   (cells*gamma + beta) @ w3 + b3
    # = (cells*gamma) @ w3 + hb @ (w2b @ w3) + (b3 + b2b @ w3)
    x = (cells * gamma).astype(compute_dtype)
    h2 = (jnp.dot(x, w3_ref[...], preferred_element_type=f32)
          + jnp.dot(h, w2b3_ref[...], preferred_element_type=f32)
          + b3_ref[...])
    h2 = jnp.maximum(h2, 0.0).astype(compute_dtype)  # ReLU; Dropout = identity (eval)

    # Final Linear with eval-mode BatchNorm folded into w4'/b4'.
    y = jnp.dot(h2, w4_ref[...], preferred_element_type=f32) + b4_ref[...]
    out_ref[...] = y.astype(out_ref.dtype)


def _round_up(x, m):
    return ((x + m - 1) // m) * m


@functools.partial(jax.jit, static_argnames=("tile_b", "use_bf16"))
def film_layer_forward(cells, cpds, params, tile_b=2048, use_bf16=False):
    """Full FiLMLayer forward (eval mode). Returns (cells_out, cpds).

    Output dtype is pinned: float32 when use_bf16=False, bfloat16 when use_bf16=True
    (bf16 mode streams activations + output in bf16; MXU accumulation stays f32).
    """
    B, in_sz = cells.shape
    _, emb_sz = cpds.shape
    hid_e = params["w1g"].shape[1]
    hid_l = params["w3"].shape[1]
    out_sz = params["w4"].shape[1]

    compute_dtype = jnp.bfloat16 if use_bf16 else jnp.float32
    out_dtype = jnp.bfloat16 if use_bf16 else jnp.float32

    # ---------- wrapper-side parameter fusion (done once under jit) ----------
    # Fused FiLM generator layer 1: one matmul produces [hg | hb].
    w1 = jnp.concatenate([params["w1g"], params["w1b"]], axis=1)            # (emb, 2*hid_e)
    b1 = jnp.concatenate([params["b1g"], params["b1b"]], axis=1)            # (1, 2*hid_e)
    # gamma head: row-stack [w2g; 0] so full-width h can be used (no lane slice).
    w2g = jnp.concatenate(
        [params["w2g"], jnp.zeros((hid_e, in_sz), jnp.float32)], axis=0)    # (2*hid_e, in)
    b2g = params["b2g"]                                                     # (1, in)
    # beta head folded through w3: [0; w2b @ w3]; its bias lands in b3.
    w2b3 = jnp.concatenate(
        [jnp.zeros((hid_e, hid_l), jnp.float32),
         params["w2b"] @ params["w3"]], axis=0)                             # (2*hid_e, hid_l)
    w3 = params["w3"]                                                       # (in, hid_l)
    b3 = params["b3"] + params["b2b"] @ params["w3"]                        # (1, hid_l)

    # Fold eval-mode BatchNorm1d into the final Linear:
    #   bn(h) = h*s + t,  s = bn_w*rsqrt(var+eps),  t = bn_b - mean*s
    #   bn(h) @ w4 + b4 = h @ (s^T * w4) + (b4 + t @ w4)
    s = params["bn_w"] * jax.lax.rsqrt(params["bn_var"] + BN_EPS)           # (1, hid_l)
    t = params["bn_b"] - params["bn_mean"] * s                              # (1, hid_l)
    w4 = params["w4"] * s.reshape(hid_l, 1)                                 # (hid_l, out)
    b4 = params["b4"] + t @ params["w4"]                                    # (1, out)

    # ---------- batch tiling ----------
    # Sublane multiple: 8 for f32 streams, 16 for bf16 (packed rows). Enforced even
    # for odd caller-supplied tile_b.
    sub = 16 if use_bf16 else 8
    io_bytes = 2 if use_bf16 else 4
    # At least 2 grid steps when the batch allows it (v7x megacore has 2 TCs).
    tb = min(_round_up(max(tile_b, 1), sub), _round_up(max(-(-B // 2), 1), sub))
    # VMEM budget cap: double-buffered activation tiles + double-buffered output,
    # kept well under the 32 MiB scoped default (64 MiB physical on v7x).
    per_row_bytes = 2 * io_bytes * (in_sz + emb_sz + out_sz)
    vmem_budget = 16 * 1024 * 1024
    tb_vmem = max(sub, (vmem_budget // per_row_bytes) // sub * sub)
    tb = max(sub, min(tb, tb_vmem))

    n_tiles = pl.cdiv(B, tb)
    B_pad = n_tiles * tb

    # Stream activations in the compute dtype: bf16 I/O halves the dominant HBM
    # traffic (weights are grid-resident, their dtype barely matters).
    cells_p = cells.astype(compute_dtype)
    cpds_p = cpds.astype(compute_dtype)
    if B_pad != B:
        cells_p = jnp.pad(cells_p, ((0, B_pad - B), (0, 0)))
        cpds_p = jnp.pad(cpds_p, ((0, B_pad - B), (0, 0)))

    param_vals = [
        w1.astype(compute_dtype), b1,
        w2g.astype(compute_dtype), b2g,
        w2b3.astype(compute_dtype),
        w3.astype(compute_dtype), b3,
        w4.astype(compute_dtype), b4,
    ]

    def row_spec(feat):
        # activation/output tiles: (tb, feat), tiled over the batch grid axis.
        # The last dim equals the full array dim, so the (8,128) rule is satisfied
        # without zero-padding columns (no 8x zero writeback on the output).
        return pl.BlockSpec((tb, feat), lambda i: (i, 0))

    def full_spec(shape):
        # parameters: grid-resident, same block at every step
        return pl.BlockSpec(shape, lambda i: (0,) * len(shape))

    grid_spec = pltpu.PrefetchScalarGridSpec(
        num_scalar_prefetch=0,
        grid=(n_tiles,),
        in_specs=[row_spec(in_sz), row_spec(emb_sz)]
                 + [full_spec(p.shape) for p in param_vals],
        out_specs=row_spec(out_sz),
    )

    kernel = functools.partial(film_layer_kernel, compute_dtype=compute_dtype)

    out = pl.pallas_call(
        kernel,
        out_shape=jax.ShapeDtypeStruct((B_pad, out_sz), out_dtype),
        grid_spec=grid_spec,
        compiler_params=pltpu.CompilerParams(
            dimension_semantics=("parallel",)),
    )(cells_p, cpds_p, *param_vals)

    # If profiling ever shows exposed DMA at large tb, bump the two activation
    # row_specs to pipeline_mode=pl.Buffered(3); resident params stay at default.
    return out[:B], cpds


def init_params(key, emb_sz, in_sz, out_sz):
    """Deterministic synthetic parameters (shapes match the PyTorch module)."""
    ks = jax.random.split(key, 12)
    hid_e = emb_sz // 2
    hid_l = in_sz // 2

    def lin(k, n_in, n_out):
        kw, kb = jax.random.split(k)
        w = jax.random.normal(kw, (n_in, n_out), jnp.float32) * (1.0 / jnp.sqrt(n_in))
        b = jax.random.normal(kb, (1, n_out), jnp.float32) * 0.01
        return w, b

    w1g, b1g = lin(ks[0], emb_sz, hid_e)
    w2g, b2g = lin(ks[1], hid_e, in_sz)
    w1b, b1b = lin(ks[2], emb_sz, hid_e)
    w2b, b2b = lin(ks[3], hid_e, in_sz)
    w3, b3 = lin(ks[4], in_sz, hid_l)
    w4, b4 = lin(ks[5], hid_l, out_sz)

    # BatchNorm1d eval-mode statistics/affine (deterministic, non-trivial)
    bn_w = 1.0 + 0.1 * jax.random.normal(ks[6], (1, hid_l), jnp.float32)
    bn_b = 0.1 * jax.random.normal(ks[7], (1, hid_l), jnp.float32)
    bn_mean = 0.1 * jax.random.normal(ks[8], (1, hid_l), jnp.float32)
    bn_var = jnp.abs(1.0 + 0.1 * jax.random.normal(ks[9], (1, hid_l), jnp.float32))

    return {
        "w1g": w1g, "b1g": b1g, "w2g": w2g, "b2g": b2g,
        "w1b": w1b, "b1b": b1b, "w2b": w2b, "b2b": b2b,
        "w3": w3, "b3": b3,
        "bn_w": bn_w, "bn_b": bn_b, "bn_mean": bn_mean, "bn_var": bn_var,
        "w4": w4, "b4": b4,
    }


def reference_forward(cells, cpds, p):
    """Plain-JAX reference of the same forward (eval mode)."""
    hg = jnp.maximum(cpds @ p["w1g"] + p["b1g"], 0.0)
    gamma = hg @ p["w2g"] + p["b2g"]
    hb = jnp.maximum(cpds @ p["w1b"] + p["b1b"], 0.0)
    beta = hb @ p["w2b"] + p["b2b"]
    x = cells * gamma + beta
    h = jnp.maximum(x @ p["w3"] + p["b3"], 0.0)
    h = (h - p["bn_mean"]) / jnp.sqrt(p["bn_var"] + BN_EPS) * p["bn_w"] + p["bn_b"]
    return h @ p["w4"] + p["b4"]


if __name__ == "__main__":
    B, emb_sz, in_sz, out_sz = 16, 32, 32, 16

    key = jax.random.PRNGKey(0)
    k_cells, k_cpds, k_params = jax.random.split(key, 3)
    cells = jax.random.normal(k_cells, (B, in_sz), jnp.float32)
    cpds = jax.random.normal(k_cpds, (B, emb_sz), jnp.float32)
    params = init_params(k_params, emb_sz, in_sz, out_sz)

    ref = reference_forward(cells, cpds, params)

    # f32 path (default): differences only from the algebraic re-association of the
    # beta/BN folds.
    out_cells, out_cpds = film_layer_forward(cells, cpds, params)
    jax.block_until_ready(out_cells)
    assert out_cells.shape == (B, out_sz)
    assert out_cells.dtype == jnp.float32
    assert out_cpds.shape == (B, emb_sz)
    assert jnp.allclose(out_cells, ref, rtol=1e-4, atol=1e-4)
    assert jnp.array_equal(out_cpds, cpds)

    # Ragged batch + odd tile_b exercises the pad/slice path and the tb rounding fix.
    Br = 13
    out_r, _ = film_layer_forward(cells[:Br], cpds[:Br], params, tile_b=100)
    jax.block_until_ready(out_r)
    assert out_r.shape == (Br, out_sz)
    assert jnp.allclose(out_r, ref[:Br], rtol=1e-4, atol=1e-4)

    # bf16 I/O path: bf16 activation/weight streams + bf16 output, f32 accumulation.
    out_bf, _ = film_layer_forward(cells, cpds, params, use_bf16=True)
    jax.block_until_ready(out_bf)
    assert out_bf.dtype == jnp.bfloat16
    assert jnp.allclose(out_bf.astype(jnp.float32), ref, rtol=5e-2, atol=3e-1)

    print("KERNEL_OK")
</pallas_src>

<mosaic_0001>
module attributes {stable_mosaic.version = 11 : i64} {
  func.func @film_layer_kernel(%arg0: i32, %arg1: memref<8x32xf32, #tpu.memory_space<vmem>>, %arg2: memref<8x32xf32, #tpu.memory_space<vmem>>, %arg3: memref<32x32xf32, #tpu.memory_space<vmem>>, %arg4: memref<1x32xf32, #tpu.memory_space<vmem>>, %arg5: memref<32x32xf32, #tpu.memory_space<vmem>>, %arg6: memref<1x32xf32, #tpu.memory_space<vmem>>, %arg7: memref<32x16xf32, #tpu.memory_space<vmem>>, %arg8: memref<32x16xf32, #tpu.memory_space<vmem>>, %arg9: memref<1x16xf32, #tpu.memory_space<vmem>>, %arg10: memref<16x16xf32, #tpu.memory_space<vmem>>, %arg11: memref<1x16xf32, #tpu.memory_space<vmem>>, %arg12: memref<8x16xf32, #tpu.memory_space<vmem>>) attributes {dimension_semantics = [#tpu.dimension_semantics<parallel>], iteration_bounds = array<i64: 2>, scalar_prefetch = 0 : i64, scratch_operands = 0 : i64, tpu.core_type = #tpu.core_type<tc>, window_params = [{transform_indices = @transform_0, window_bounds = array<i64: 8, 32>}, {transform_indices = @transform_1, window_bounds = array<i64: 8, 32>}, {pipeline_mode = #tpu.pipeline_mode<synchronous>, transform_indices = @transform_2, window_bounds = array<i64: 32, 32>}, {pipeline_mode = #tpu.pipeline_mode<synchronous>, transform_indices = @transform_3, window_bounds = array<i64: 1, 32>}, {pipeline_mode = #tpu.pipeline_mode<synchronous>, transform_indices = @transform_4, window_bounds = array<i64: 32, 32>}, {pipeline_mode = #tpu.pipeline_mode<synchronous>, transform_indices = @transform_5, window_bounds = array<i64: 1, 32>}, {pipeline_mode = #tpu.pipeline_mode<synchronous>, transform_indices = @transform_6, window_bounds = array<i64: 32, 16>}, {pipeline_mode = #tpu.pipeline_mode<synchronous>, transform_indices = @transform_7, window_bounds = array<i64: 32, 16>}, {pipeline_mode = #tpu.pipeline_mode<synchronous>, transform_indices = @transform_8, window_bounds = array<i64: 1, 16>}, {pipeline_mode = #tpu.pipeline_mode<synchronous>, transform_indices = @transform_9, window_bounds = array<i64: 16, 16>}, {pipeline_mode = #tpu.pipeline_mode<synchronous>, transform_indices = @transform_10, window_bounds = array<i64: 1, 16>}, {transform_indices = @transform_11, window_bounds = array<i64: 8, 16>}]} {
    %c0 = arith.constant 0 : index
    %c0_0 = arith.constant 0 : index
    %0 = vector.load %arg1[%c0, %c0_0] : memref<8x32xf32, #tpu.memory_space<vmem>>, vector<8x32xf32>
    %c0_1 = arith.constant 0 : index
    %c0_2 = arith.constant 0 : index
    %1 = vector.load %arg2[%c0_1, %c0_2] : memref<8x32xf32, #tpu.memory_space<vmem>>, vector<8x32xf32>
    %c0_3 = arith.constant 0 : index
    %c0_4 = arith.constant 0 : index
    %2 = vector.load %arg3[%c0_3, %c0_4] : memref<32x32xf32, #tpu.memory_space<vmem>>, vector<32x32xf32>
    %cst = arith.constant dense<0.000000e+00> : vector<8x32xf32>
    %3 = tpu.matmul %1, %2, %cst {dimension_numbers = #tpu.dot_dimension_numbers<[1], [0], [0], [1], [0, 0, 1, 1], [], []>} : vector<8x32xf32>, vector<32x32xf32>, vector<8x32xf32> -> vector<8x32xf32>
    %c0_5 = arith.constant 0 : index
    %c0_6 = arith.constant 0 : index
    %4 = vector.load %arg4[%c0_5, %c0_6] : memref<1x32xf32, #tpu.memory_space<vmem>>, vector<1x32xf32>
    %5 = vector.broadcast %4 : vector<1x32xf32> to vector<8x32xf32>
    %6 = arith.addf %3, %5 : vector<8x32xf32>
    %cst_7 = arith.constant 0.000000e+00 : f32
    %7 = vector.broadcast %cst_7 : f32 to vector<8x32xf32>
    %8 = arith.maximumf %6, %7 : vector<8x32xf32>
    %c0_8 = arith.constant 0 : index
    %c0_9 = arith.constant 0 : index
    %9 = vector.load %arg5[%c0_8, %c0_9] : memref<32x32xf32, #tpu.memory_space<vmem>>, vector<32x32xf32>
    %cst_10 = arith.constant dense<0.000000e+00> : vector<8x32xf32>
    %10 = tpu.matmul %8, %9, %cst_10 {dimension_numbers = #tpu.dot_dimension_numbers<[1], [0], [0], [1], [0, 0, 1, 1], [], []>} : vector<8x32xf32>, vector<32x32xf32>, vector<8x32xf32> -> vector<8x32xf32>
    %c0_11 = arith.constant 0 : index
    %c0_12 = arith.constant 0 : index
    %11 = vector.load %arg6[%c0_11, %c0_12] : memref<1x32xf32, #tpu.memory_space<vmem>>, vector<1x32xf32>
    %12 = vector.broadcast %11 : vector<1x32xf32> to vector<8x32xf32>
    %13 = arith.addf %10, %12 : vector<8x32xf32>
    %14 = arith.mulf %0, %13 : vector<8x32xf32>
    %c0_13 = arith.constant 0 : index
    %c0_14 = arith.constant 0 : index
    %15 = vector.load %arg8[%c0_13, %c0_14] : memref<32x16xf32, #tpu.memory_space<vmem>>, vector<32x16xf32>
    %cst_15 = arith.constant dense<0.000000e+00> : vector<8x16xf32>
    %16 = tpu.matmul %14, %15, %cst_15 {dimension_numbers = #tpu.dot_dimension_numbers<[1], [0], [0], [1], [0, 0, 1, 1], [], []>} : vector<8x32xf32>, vector<32x16xf32>, vector<8x16xf32> -> vector<8x16xf32>
    %c0_16 = arith.constant 0 : index
    %c0_17 = arith.constant 0 : index
    %17 = vector.load %arg7[%c0_16, %c0_17] : memref<32x16xf32, #tpu.memory_space<vmem>>, vector<32x16xf32>
    %cst_18 = arith.constant dense<0.000000e+00> : vector<8x16xf32>
    %18 = tpu.matmul %8, %17, %cst_18 {dimension_numbers = #tpu.dot_dimension_numbers<[1], [0], [0], [1], [0, 0, 1, 1], [], []>} : vector<8x32xf32>, vector<32x16xf32>, vector<8x16xf32> -> vector<8x16xf32>
    %19 = arith.addf %16, %18 : vector<8x16xf32>
    %c0_19 = arith.constant 0 : index
    %c0_20 = arith.constant 0 : index
    %20 = vector.load %arg9[%c0_19, %c0_20] : memref<1x16xf32, #tpu.memory_space<vmem>>, vector<1x16xf32>
    %21 = vector.broadcast %20 : vector<1x16xf32> to vector<8x16xf32>
    %22 = arith.addf %19, %21 : vector<8x16xf32>
    %cst_21 = arith.constant 0.000000e+00 : f32
    %23 = vector.broadcast %cst_21 : f32 to vector<8x16xf32>
    %24 = arith.maximumf %22, %23 : vector<8x16xf32>
    %c0_22 = arith.constant 0 : index
    %c0_23 = arith.constant 0 : index
    %25 = vector.load %arg10[%c0_22, %c0_23] : memref<16x16xf32, #tpu.memory_space<vmem>>, vector<16x16xf32>
    %cst_24 = arith.constant dense<0.000000e+00> : vector<8x16xf32>
    %26 = tpu.matmul %24, %25, %cst_24 {dimension_numbers = #tpu.dot_dimension_numbers<[1], [0], [0], [1], [0, 0, 1, 1], [], []>} : vector<8x16xf32>, vector<16x16xf32>, vector<8x16xf32> -> vector<8x16xf32>
    %c0_25 = arith.constant 0 : index
    %c0_26 = arith.constant 0 : index
    %27 = vector.load %arg11[%c0_25, %c0_26] : memref<1x16xf32, #tpu.memory_space<vmem>>, vector<1x16xf32>
    %28 = vector.broadcast %27 : vector<1x16xf32> to vector<8x16xf32>
    %29 = arith.addf %26, %28 : vector<8x16xf32>
    %c0_27 = arith.constant 0 : index
    %c0_28 = arith.constant 0 : index
    %30 = vector.load %arg12[%c0_27, %c0_28] : memref<8x16xf32, #tpu.memory_space<vmem>>, vector<8x16xf32>
    tpu.vector_store %arg12[%c0_27, %c0_28], %29 {strides = array<i32>} : memref<8x16xf32, #tpu.memory_space<vmem>>, vector<8x16xf32>,
    return
  }
  func.func @transform_0(%arg0: i32) -> (i32, i32) {
    %c0_i32 = arith.constant 0 : i32
    %c0_i32_0 = arith.constant 0 : i32
    return %arg0, %c0_i32 : i32, i32
  }
  func.func @transform_1(%arg0: i32) -> (i32, i32) {
    %c0_i32 = arith.constant 0 : i32
    %c0_i32_0 = arith.constant 0 : i32
    return %arg0, %c0_i32 : i32, i32
  }
  func.func @transform_2(%arg0: i32) -> (i32, i32) {
    %c0_i32 = arith.constant 0 : i32
    %c0_i32_0 = arith.constant 0 : i32
    %c0_i32_1 = arith.constant 0 : i32
    return %c0_i32, %c0_i32_0 : i32, i32
  }
  func.func @transform_3(%arg0: i32) -> (i32, i32) {
    %c0_i32 = arith.constant 0 : i32
    %c0_i32_0 = arith.constant 0 : i32
    %c0_i32_1 = arith.constant 0 : i32
    return %c0_i32, %c0_i32_0 : i32, i32
  }
  func.func @transform_4(%arg0: i32) -> (i32, i32) {
    %c0_i32 = arith.constant 0 : i32
    %c0_i32_0 = arith.constant 0 : i32
    %c0_i32_1 = arith.constant 0 : i32
    return %c0_i32, %c0_i32_0 : i32, i32
  }
  func.func @transform_5(%arg0: i32) -> (i32, i32) {
    %c0_i32 = arith.constant 0 : i32
    %c0_i32_0 = arith.constant 0 : i32
    %c0_i32_1 = arith.constant 0 : i32
    return %c0_i32, %c0_i32_0 : i32, i32
  }
  func.func @transform_6(%arg0: i32) -> (i32, i32) {
    %c0_i32 = arith.constant 0 : i32
    %c0_i32_0 = arith.constant 0 : i32
    %c0_i32_1 = arith.constant 0 : i32
    return %c0_i32, %c0_i32_0 : i32, i32
  }
  func.func @transform_7(%arg0: i32) -> (i32, i32) {
    %c0_i32 = arith.constant 0 : i32
    %c0_i32_0 = arith.constant 0 : i32
    %c0_i32_1 = arith.constant 0 : i32
    return %c0_i32, %c0_i32_0 : i32, i32
  }
  func.func @transform_8(%arg0: i32) -> (i32, i32) {
    %c0_i32 = arith.constant 0 : i32
    %c0_i32_0 = arith.constant 0 : i32
    %c0_i32_1 = arith.constant 0 : i32
    return %c0_i32, %c0_i32_0 : i32, i32
  }
  func.func @transform_9(%arg0: i32) -> (i32, i32) {
    %c0_i32 = arith.constant 0 : i32
    %c0_i32_0 = arith.constant 0 : i32
    %c0_i32_1 = arith.constant 0 : i32
    return %c0_i32, %c0_i32_0 : i32, i32
  }
  func.func @transform_10(%arg0: i32) -> (i32, i32) {
    %c0_i32 = arith.constant 0 : i32
    %c0_i32_0 = arith.constant 0 : i32
    %c0_i32_1 = arith.constant 0 : i32
    return %c0_i32, %c0_i32_0 : i32, i32
  }
  func.func @transform_11(%arg0: i32) -> (i32, i32) {
    %c0_i32 = arith.constant 0 : i32
    %c0_i32_0 = arith.constant 0 : i32
    return %arg0, %c0_i32 : i32, i32
  }
}

</mosaic_0001>

<llo_original>
// kernel: film_layer_forward.1
$region0: #{film_layer_forward.1}
  #allocation0 [shape = 'u32[]', space=smem, size = 0x4, offset = 0x4, fixed_abs, tag = 'smem constant byte address 0x4 - core index']
  #allocation1 [shape = 'u32[72,128]{1,0:T(1,128)}', space=vmem, size = 0x9000, scoped, tag = 'internal scratch']
  %s0 = inlined_call_operand.vmem [shape: f32[16,32], index: 0, kind: input, shape index: {}]
  %s1 = inlined_call_operand.vmem [shape: f32[16,32], index: 1, kind: input, shape index: {}]
  %s2 = inlined_call_operand.vmem [shape: f32[32,32], index: 2, kind: input, shape index: {}]
  %s3 = inlined_call_operand.vmem [shape: f32[1,32], index: 3, kind: input, shape index: {}]
  %s4 = inlined_call_operand.vmem [shape: f32[32,32], index: 4, kind: input, shape index: {}]
  %s5 = inlined_call_operand.vmem [shape: f32[1,32], index: 5, kind: input, shape index: {}]
  %s6 = inlined_call_operand.vmem [shape: f32[32,16], index: 6, kind: input, shape index: {}]
  %s7 = inlined_call_operand.vmem [shape: f32[32,16], index: 7, kind: input, shape index: {}]
  %s8 = inlined_call_operand.vmem [shape: f32[1,16], index: 8, kind: input, shape index: {}]
  %s9 = inlined_call_operand.vmem [shape: f32[16,16], index: 9, kind: input, shape index: {}]
  %s10 = inlined_call_operand.vmem [shape: f32[1,16], index: 10, kind: input, shape index: {}]
  %s11 = inlined_call_operand.hbm [shape: f32[16,16], index: 11, kind: output, shape index: {}]
  %s12 = sld [smem:[#allocation0]]
  $region77: #{film_layer_forward.1} parent=0
    _
  %s14 = ssub.s32 1, %s12
  %s15 = scalar_select 0, %s14, %s12
  $region1: #{film_layer_forward.1} parent=0
    #allocation2 [shape = 'u8[8192]{0}', space=vmem, size = 0x2000, scoped, tag = 'output window, operand 0']
    #allocation3 [shape = 's32[2]{0}', space=sflag, size = 0x8, scoped, tag = 'scoped memory for film_layer_forward.1']
    %16 = vsyncpa [#allocation3], 0
    %s17 = scalar_lea.sflag [#allocation3], 1
    %18 = vsyncpa %s17, 0
    loop: start=0, step=1, limit=4
    $region2: #{film_layer_forward.1} parent=1 // loop_pre_header
      _
    $region3: #{film_layer_forward.1} parent=1 // loop_header
      %s20 = sphi 0, %s24
      %p21 = scmp.ge.s32.totalorder %s20, 4
      %s30 = sphi 0, %s32
      %s33 = sphi 0, %s30
      %s34 = sphi 0, %s33
      %s50 = sphi 0, %s34
      %s56 = sphi 0, %s58
      %s59 = sphi 0, %s56
      %s60 = sphi 0, %s59
      %s76 = sphi 0, %s60
      %s80 = sphi 0, %s80
      %s82 = sphi 0, %s80
      %s83 = sphi 0, %s82
      %s97 = sphi 0, %s83
      %s101 = sphi 0, %s101
      %s103 = sphi 0, %s101
      %s104 = sphi 0, %s103
      %s118 = sphi 0, %s104
      %s122 = sphi 0, %s122
      %s124 = sphi 0, %s122
      %s125 = sphi 0, %s124
      %s139 = sphi 0, %s125
      %s143 = sphi 0, %s143
      %s145 = sphi 0, %s143
      %s146 = sphi 0, %s145
      %s160 = sphi 0, %s146
      %s164 = sphi 0, %s164
      %s166 = sphi 0, %s164
      %s167 = sphi 0, %s166
      %s181 = sphi 0, %s167
      %s185 = sphi 0, %s185
      %s187 = sphi 0, %s185
      %s188 = sphi 0, %s187
      %s202 = sphi 0, %s188
      %s206 = sphi 0, %s206
      %s208 = sphi 0, %s206
      %s209 = sphi 0, %s208
      %s223 = sphi 0, %s209
      %s227 = sphi 0, %s227
      %s229 = sphi 0, %s227
      %s230 = sphi 0, %s229
      %s244 = sphi 0, %s230
      %s248 = sphi 0, %s248
      %s250 = sphi 0, %s248
      %s251 = sphi 0, %s250
      %s265 = sphi 0, %s251
      %s271 = sphi 0, %s273
      %s274 = sphi 0, %s271
      %s275 = sphi 0, %s274
      %s291 = sphi 0, %s275
    $region4: #{film_layer_forward.1} parent=1 // loop_header_branch
      %23 = sbr.rel (%p21) target = $region8
    $region5: #{film_layer_forward.1} parent=1 // loop_body
      %s25 = ssub.s32 %s20, 1
      %s26 = ssub.s32 %s20, 2
      %s27 = sadd.s32 %s20, 1
      %s28 = ssub.s32 %s20, %s27
      %p29 = scmp.eq.s32.totalorder %s28, 0
      %s31 = sadd.s32 %s30, 1
      %s32 = scalar_select %p29, %s30, %s31
      %p35 = pneg %p29
      %p36 = scmp.eq.s32.totalorder %s20, 1
      %p37 = por %p35, %p36
      %p38 = scmp.ne.s32.totalorder %s30, %s33
      %p39 = scmp.eq.s32.totalorder %s20, 0
      %p40 = por %p38, %p39
      %p41 = scmp.ne.s32.totalorder %s30, %s33
      %p42 = scmp.eq.s32.totalorder %s25, 1
      %p43 = por %p41, %p42
      %p44 = scmp.ne.s32.totalorder %s33, %s34
      %p45 = scmp.eq.s32.totalorder %s25, 0
      %p46 = por %p44, %p45
      %p47 = scmp.ne.s32.totalorder %s33, %s34
      %p48 = scmp.eq.s32.totalorder %s26, 1
      %p49 = por %p47, %p48
      %p51 = scmp.ne.s32.totalorder %s34, %s50
      %p52 = scmp.eq.s32.totalorder %s26, 0
      %p53 = por %p51, %p52
      %s54 = ssub.s32 %s20, %s27
      %p55 = scmp.eq.s32.totalorder %s54, 0
      %s57 = sadd.s32 %s56, 1
      %s58 = scalar_select %p55, %s56, %s57
      %p61 = pneg %p55
      %p62 = scmp.eq.s32.totalorder %s20, 1
      %p63 = por %p61, %p62
      %p64 = scmp.ne.s32.totalorder %s56, %s59
      %p65 = scmp.eq.s32.totalorder %s20, 0
      %p66 = por %p64, %p65
      %p67 = scmp.ne.s32.totalorder %s56, %s59
      %p68 = scmp.eq.s32.totalorder %s25, 1
      %p69 = por %p67, %p68
      %p70 = scmp.ne.s32.totalorder %s59, %s60
      %p71 = scmp.eq.s32.totalorder %s25, 0
      %p72 = por %p70, %p71
      %p73 = scmp.ne.s32.totalorder %s59, %s60
      %p74 = scmp.eq.s32.totalorder %s26, 1
      %p75 = por %p73, %p74
      %p77 = scmp.ne.s32.totalorder %s60, %s76
      %p78 = scmp.eq.s32.totalorder %s26, 0
      %p79 = por %p77, %p78
      %s81 = sadd.s32 %s80, 1
      %p84 = scmp.eq.s32.totalorder %s20, 1
      %p85 = scmp.ne.s32.totalorder %s80, %s82
      %p86 = scmp.eq.s32.totalorder %s20, 0
      %p87 = por %p85, %p86
      %p88 = scmp.ne.s32.totalorder %s80, %s82
      %p89 = scmp.eq.s32.totalorder %s25, 1
      %p90 = por %p88, %p89
      %p91 = scmp.ne.s32.totalorder %s82, %s83
      %p92 = scmp.eq.s32.totalorder %s25, 0
      %p93 = por %p91, %p92
      %p94 = scmp.ne.s32.totalorder %s82, %s83
      %p95 = scmp.eq.s32.totalorder %s26, 1
      %p96 = por %p94, %p95
      %p98 = scmp.ne.s32.totalorder %s83, %s97
      %p99 = scmp.eq.s32.totalorder %s26, 0
      %p100 = por %p98, %p99
      %s102 = sadd.s32 %s101, 1
      %p105 = scmp.eq.s32.totalorder %s20, 1
      %p106 = scmp.ne.s32.totalorder %s101, %s103
      %p107 = scmp.eq.s32.totalorder %s20, 0
      %p108 = por %p106, %p107
      %p109 = scmp.ne.s32.totalorder %s101, %s103
      %p110 = scmp.eq.s32.totalorder %s25, 1
      %p111 = por %p109, %p110
      %p112 = scmp.ne.s32.totalorder %s103, %s104
      %p113 = scmp.eq.s32.totalorder %s25, 0
      %p114 = por %p112, %p113
      %p115 = scmp.ne.s32.totalorder %s103, %s104
      %p116 = scmp.eq.s32.totalorder %s26, 1
      %p117 = por %p115, %p116
      %p119 = scmp.ne.s32.totalorder %s104, %s118
      %p120 = scmp.eq.s32.totalorder %s26, 0
      %p121 = por %p119, %p120
      %s123 = sadd.s32 %s122, 1
      %p126 = scmp.eq.s32.totalorder %s20, 1
      %p127 = scmp.ne.s32.totalorder %s122, %s124
      %p128 = scmp.eq.s32.totalorder %s20, 0
      %p129 = por %p127, %p128
      %p130 = scmp.ne.s32.totalorder %s122, %s124
      %p131 = scmp.eq.s32.totalorder %s25, 1
      %p132 = por %p130, %p131
      %p133 = scmp.ne.s32.totalorder %s124, %s125
      %p134 = scmp.eq.s32.totalorder %s25, 0
      %p135 = por %p133, %p134
      %p136 = scmp.ne.s32.totalorder %s124, %s125
      %p137 = scmp.eq.s32.totalorder %s26, 1
      %p138 = por %p136, %p137
      %p140 = scmp.ne.s32.totalorder %s125, %s139
      %p141 = scmp.eq.s32.totalorder %s26, 0
      %p142 = por %p140, %p141
      %s144 = sadd.s32 %s143, 1
      %p147 = scmp.eq.s32.totalorder %s20, 1
      %p148 = scmp.ne.s32.totalorder %s143, %s145
      %p149 = scmp.eq.s32.totalorder %s20, 0
      %p150 = por %p148, %p149
      %p151 = scmp.ne.s32.totalorder %s143, %s145
      %p152 = scmp.eq.s32.totalorder %s25, 1
      %p153 = por %p151, %p152
      %p154 = scmp.ne.s32.totalorder %s145, %s146
      %p155 = scmp.eq.s32.totalorder %s25, 0
      %p156 = por %p154, %p155
      %p157 = scmp.ne.s32.totalorder %s145, %s146
      %p158 = scmp.eq.s32.totalorder %s26, 1
      %p159 = por %p157, %p158
      %p161 = scmp.ne.s32.totalorder %s146, %s160
      %p162 = scmp.eq.s32.totalorder %s26, 0
      %p163 = por %p161, %p162
      %s165 = sadd.s32 %s164, 1
      %p168 = scmp.eq.s32.totalorder %s20, 1
      %p169 = scmp.ne.s32.totalorder %s164, %s166
      %p170 = scmp.eq.s32.totalorder %s20, 0
      %p171 = por %p169, %p170
      %p172 = scmp.ne.s32.totalorder %s164, %s166
      %p173 = scmp.eq.s32.totalorder %s25, 1
      %p174 = por %p172, %p173
      %p175 = scmp.ne.s32.totalorder %s166, %s167
      %p176 = scmp.eq.s32.totalorder %s25, 0
      %p177 = por %p175, %p176
      %p178 = scmp.ne.s32.totalorder %s166, %s167
      %p179 = scmp.eq.s32.totalorder %s26, 1
      %p180 = por %p178, %p179
      %p182 = scmp.ne.s32.totalorder %s167, %s181
      %p183 = scmp.eq.s32.totalorder %s26, 0
      %p184 = por %p182, %p183
      %s186 = sadd.s32 %s185, 1
      %p189 = scmp.eq.s32.totalorder %s20, 1
      %p190 = scmp.ne.s32.totalorder %s185, %s187
      %p191 = scmp.eq.s32.totalorder %s20, 0
      %p192 = por %p190, %p191
      %p193 = scmp.ne.s32.totalorder %s185, %s187
      %p194 = scmp.eq.s32.totalorder %s25, 1
      %p195 = por %p193, %p194
      %p196 = scmp.ne.s32.totalorder %s187, %s188
      %p197 = scmp.eq.s32.totalorder %s25, 0
      %p198 = por %p196, %p197
      %p199 = scmp.ne.s32.totalorder %s187, %s188
      %p200 = scmp.eq.s32.totalorder %s26, 1
      %p201 = por %p199, %p200
      %p203 = scmp.ne.s32.totalorder %s188, %s202
      %p204 = scmp.eq.s32.totalorder %s26, 0
      %p205 = por %p203, %p204
      %s207 = sadd.s32 %s206, 1
      %p210 = scmp.eq.s32.totalorder %s20, 1
      %p211 = scmp.ne.s32.totalorder %s206, %s208
      %p212 = scmp.eq.s32.totalorder %s20, 0
      %p213 = por %p211, %p212
      %p214 = scmp.ne.s32.totalorder %s206, %s208
      %p215 = scmp.eq.s32.totalorder %s25, 1
      %p216 = por %p214, %p215
      %p217 = scmp.ne.s32.totalorder %s208, %s209
      %p218 = scmp.eq.s32.totalorder %s25, 0
      %p219 = por %p217, %p218
      %p220 = scmp.ne.s32.totalorder %s208, %s209
      %p221 = scmp.eq.s32.totalorder %s26, 1
      %p222 = por %p220, %p221
      %p224 = scmp.ne.s32.totalorder %s209, %s223
      %p225 = scmp.eq.s32.totalorder %s26, 0
      %p226 = por %p224, %p225
      %s228 = sadd.s32 %s227, 1
      %p231 = scmp.eq.s32.totalorder %s20, 1
      %p232 = scmp.ne.s32.totalorder %s227, %s229
      %p233 = scmp.eq.s32.totalorder %s20, 0
      %p234 = por %p232, %p233
      %p235 = scmp.ne.s32.totalorder %s227, %s229
      %p236 = scmp.eq.s32.totalorder %s25, 1
      %p237 = por %p235, %p236
      %p238 = scmp.ne.s32.totalorder %s229, %s230
      %p239 = scmp.eq.s32.totalorder %s25, 0
      %p240 = por %p238, %p239
      %p241 = scmp.ne.s32.totalorder %s229, %s230
      %p242 = scmp.eq.s32.totalorder %s26, 1
      %p243 = por %p241, %p242
      %p245 = scmp.ne.s32.totalorder %s230, %s244
      %p246 = scmp.eq.s32.totalorder %s26, 0
      %p247 = por %p245, %p246
      %s249 = sadd.s32 %s248, 1
      %p252 = scmp.eq.s32.totalorder %s20, 1
      %p253 = scmp.ne.s32.totalorder %s248, %s250
      %p254 = scmp.eq.s32.totalorder %s20, 0
      %p255 = por %p253, %p254
      %p256 = scmp.ne.s32.totalorder %s248, %s250
      %p257 = scmp.eq.s32.totalorder %s25, 1
      %p258 = por %p256, %p257
      %p259 = scmp.ne.s32.totalorder %s250, %s251
      %p260 = scmp.eq.s32.totalorder %s25, 0
      %p261 = por %p259, %p260
      %p262 = scmp.ne.s32.totalorder %s250, %s251
      %p263 = scmp.eq.s32.totalorder %s26, 1
      %p264 = por %p262, %p263
      %p266 = scmp.ne.s32.totalorder %s251, %s265
      %p267 = scmp.eq.s32.totalorder %s26, 0
      %p268 = por %p266, %p267
      %s269 = ssub.s32 %s20, %s27
      %p270 = scmp.eq.s32.totalorder %s269, 0
      %s272 = sadd.s32 %s271, 1
      %s273 = scalar_select %p270, %s271, %s272
      %p276 = pneg %p270
      %p277 = scmp.eq.s32.totalorder %s20, 1
      %p278 = por %p276, %p277
      %p279 = scmp.ne.s32.totalorder %s271, %s274
      %p280 = scmp.eq.s32.totalorder %s20, 0
      %p281 = por %p279, %p280
      %p282 = scmp.ne.s32.totalorder %s271, %s274
      %p283 = scmp.eq.s32.totalorder %s25, 1
      %p284 = por %p282, %p283
      %p285 = scmp.ne.s32.totalorder %s274, %s275
      %p286 = scmp.eq.s32.totalorder %s25, 0
      %p287 = por %p285, %p286
      %p288 = scmp.ne.s32.totalorder %s274, %s275
      %p289 = scmp.eq.s32.totalorder %s26, 1
      %p290 = por %p288, %p289
      %p292 = scmp.ne.s32.totalorder %s275, %s291
      %p293 = scmp.eq.s32.totalorder %s26, 0
      %p294 = por %p292, %p293
      %p295 = scmp.le.s32.totalorder 1, %s20
      %p296 = scmp.lt.s32.totalorder %s20, 3
      %p297 = pnand %p295, %p296
      %p298 = pneg %p297
      // Predicated region
      $region9: #{film_layer_forward.1} parent=5 // pred_check
        _
      $region10: #{film_layer_forward.1} parent=5 // pred_check_branch
        %300 = sbr.rel (%p297) target = $region12
      $region11: #{film_layer_forward.1} parent=5 // pred_region
        %s301 = ssub.s32 %s20, 1
        // Predicated region
        $region13: #{film_layer_forward.1} parent=11 // pred_check
          %p302 = pneg %p93
        $region14: #{film_layer_forward.1} parent=11 // pred_check_branch
          %304 = sbr.rel (%p302) target = $region16
        $region15: #{film_layer_forward.1} parent=11 // pred_region
          _
        $region16: #{film_layer_forward.1} parent=11 // pred_fallthru
          _
        // Predicated region
        $region17: #{film_layer_forward.1} parent=11 // pred_check
          %p305 = pneg %p114
        $region18: #{film_layer_forward.1} parent=11 // pred_check_branch
          %307 = sbr.rel (%p305) target = $region20
        $region19: #{film_layer_forward.1} parent=11 // pred_region
          _
        $region20: #{film_layer_forward.1} parent=11 // pred_fallthru
          _
        // Predicated region
        $region21: #{film_layer_forward.1} parent=11 // pred_check
          %p308 = pneg %p135
        $region22: #{film_layer_forward.1} parent=11 // pred_check_branch
          %310 = sbr.rel (%p308) target = $region24
        $region23: #{film_layer_forward.1} parent=11 // pred_region
          _
        $region24: #{film_layer_forward.1} parent=11 // pred_fallthru
          _
        // Predicated region
        $region25: #{film_layer_forward.1} parent=11 // pred_check
          %p311 = pneg %p156
        $region26: #{film_layer_forward.1} parent=11 // pred_check_branch
          %313 = sbr.rel (%p311) target = $region28
        $region27: #{film_layer_forward.1} parent=11 // pred_region
          _
        $region28: #{film_layer_forward.1} parent=11 // pred_fallthru
          _
        // Predicated region
        $region29: #{film_layer_forward.1} parent=11 // pred_check
          %p314 = pneg %p177
        $region30: #{film_layer_forward.1} parent=11 // pred_check_branch
          %316 = sbr.rel (%p314) target = $region32
        $region31: #{film_layer_forward.1} parent=11 // pred_region
          _
        $region32: #{film_layer_forward.1} parent=11 // pred_fallthru
          _
        // Predicated region
        $region33: #{film_layer_forward.1} parent=11 // pred_check
          %p317 = pneg %p198
        $region34: #{film_layer_forward.1} parent=11 // pred_check_branch
          %319 = sbr.rel (%p317) target = $region36
        $region35: #{film_layer_forward.1} parent=11 // pred_region
          _
        $region36: #{film_layer_forward.1} parent=11 // pred_fallthru
          _
        // Predicated region
        $region37: #{film_layer_forward.1} parent=11 // pred_check
          %p320 = pneg %p219
        $region38: #{film_layer_forward.1} parent=11 // pred_check_branch
          %322 = sbr.rel (%p320) target = $region40
        $region39: #{film_layer_forward.1} parent=11 // pred_region
          _
        $region40: #{film_layer_forward.1} parent=11 // pred_fallthru
          _
        // Predicated region
        $region41: #{film_layer_forward.1} parent=11 // pred_check
          %p323 = pneg %p240
        $region42: #{film_layer_forward.1} parent=11 // pred_check_branch
          %325 = sbr.rel (%p323) target = $region44
        $region43: #{film_layer_forward.1} parent=11 // pred_region
          _
        $region44: #{film_layer_forward.1} parent=11 // pred_fallthru
          _
        // Predicated region
        $region45: #{film_layer_forward.1} parent=11 // pred_check
          %p326 = pneg %p261
        $region46: #{film_layer_forward.1} parent=11 // pred_check_branch
          %328 = sbr.rel (%p326) target = $region48
        $region47: #{film_layer_forward.1} parent=11 // pred_region
          _
        $region48: #{film_layer_forward.1} parent=11 // pred_fallthru
          _
      $region12: #{film_layer_forward.1} parent=5 // pred_fallthru
        _
      %p329 = scmp.lt.s32.totalorder %s20, 2
      // Predicated region
      $region49: #{film_layer_forward.1} parent=5 // pred_check
        %p330 = pneg %p329
      $region50: #{film_layer_forward.1} parent=5 // pred_check_branch
        %332 = sbr.rel (%p330) target = $region52
      $region51: #{film_layer_forward.1} parent=5 // pred_region
        // Predicated region
        $region53: #{film_layer_forward.1} parent=51 // pred_check
          %p333 = pneg %p40
        $region54: #{film_layer_forward.1} parent=51 // pred_check_branch
          %335 = sbr.rel (%p333) target = $region56
        $region55: #{film_layer_forward.1} parent=51 // pred_region
          %p336 = scmp.lt.s32.totalorder %s20, 1
          %s337 = scalar_select %p336, %s20, 1
          %s338 = smul.addr %s337, 8
          %s339 = scalar_lea.vmem %s0, %s338
        $region56: #{film_layer_forward.1} parent=51 // pred_fallthru
          _
        // Predicated region
        $region57: #{film_layer_forward.1} parent=51 // pred_check
          %p340 = pneg %p66
        $region58: #{film_layer_forward.1} parent=51 // pred_check_branch
          %342 = sbr.rel (%p340) target = $region60
        $region59: #{film_layer_forward.1} parent=51 // pred_region
          %p343 = scmp.lt.s32.totalorder %s20, 1
          %s344 = scalar_select %p343, %s20, 1
          %s345 = smul.addr %s344, 8
          %s346 = scalar_lea.vmem %s1, %s345
        $region60: #{film_layer_forward.1} parent=51 // pred_fallthru
          _
      $region52: #{film_layer_forward.1} parent=5 // pred_fallthru
        _
      %p347 = scmp.le.s32.totalorder 1, %s20
      %p348 = scmp.lt.s32.totalorder %s20, 3
      %p349 = pnand %p347, %p348
      %p350 = pneg %p349
      // Predicated region
      $region61: #{film_layer_forward.1} parent=5 // pred_check
        _
      $region62: #{film_layer_forward.1} parent=5 // pred_check_branch
        %352 = sbr.rel (%p349) target = $region64
      $region63: #{film_layer_forward.1} parent=5 // pred_region
        %s353 = ssub.s32 %s20, 1
        %p354 = scmp.lt.s32.totalorder %s25, 1
        %s355 = scalar_select %p354, %s25, 1
        %s356 = smul.addr %s355, 8
        %s357 = scalar_lea.vmem %s0, %s356
        %p358 = pneg %p46
        %p359 = pneg %p43
        %p360 = scmp.lt.s32.totalorder %s25, 1
        %s361 = scalar_select %p360, %s25, 1
        %s362 = smul.addr %s361, 8
        %s363 = scalar_lea.vmem %s1, %s362
        %p364 = pneg %p72
        %p365 = pneg %p69
        %p366 = pneg %p93
        %p367 = pneg %p90
        %p368 = pneg %p114
        %p369 = pneg %p111
        %p370 = pneg %p135
        %p371 = pneg %p132
        %p372 = pneg %p156
        %p373 = pneg %p153
        %p374 = pneg %p177
        %p375 = pneg %p174
        %p376 = pneg %p198
        %p377 = pneg %p195
        %p378 = pneg %p219
        %p379 = pneg %p216
        %p380 = pneg %p240
        %p381 = pneg %p237
        %p382 = pneg %p261
        %p383 = pneg %p258
        %p384 = pneg %p287
        %p385 = pneg %p284
        %s386 = sand.u32 %s274, 1
        %s387 = scalar_lea.sflag [#allocation3], %s386
        %s388 = sand.u32 %s274, 1
        %s389 = smul.addr %s388, 8
        %s390 = scalar_lea.vmem [#allocation2], %s389
        %p391 = scmp.lt.s32.totalorder %s25, 1
        %s392 = scalar_select %p391, %s25, 1
        %s393 = smul.addr %s392, 8
        %s394 = scalar_lea.vmem %s0, %s393
        %p395 = scmp.lt.s32.totalorder %s25, 1
        %s396 = scalar_select %p395, %s25, 1
        %s397 = smul.addr %s396, 8
        %s398 = scalar_lea.vmem %s1, %s397
        %v399 = vld [vmem:[%s394] sm:$0xff]
        %v400 = vld [vmem:[%s398] sm:$0xff]
        %v401 = vld [vmem:[%s2] sm:$0xff]
        %v402 = vld [vmem:[%s2 + $0x8] sm:$0xff]
        %v403 = vld [vmem:[%s2 + $0x10] sm:$0xff]
        %v404 = vld [vmem:[%s2 + $0x18] sm:$0xff]
        %v405 = vld [vmem:[%s3] sm:$0x1]
        %v407 = vperm.slane %v405, 0
        %vm409 = vcmask 261120
        %v411 = vsel %vm409, %v400, 0
        %413 = vmatpush.msra.mxu0 0.0
        %414 = vmatpush.msra.mxu0 0.0
        %415 = vmatpush.msra.mxu0 0.0
        %416 = vmatpush.msra.mxu0 0.0
        %417 = vmatpush.msra.mxu0 0.0
        %418 = vmatpush.msra.mxu0 0.0
        %419 = vmatpush.msra.mxu0 0.0
        %420 = vmatpush.msra.mxu0 0.0
        %421 = vmatpush.msra.mxu0 0.0
        %422 = vmatpush.msra.mxu0 0.0
        %423 = vmatpush.msra.mxu0 0.0
        %424 = vmatpush.msra.mxu0 0.0
        %425 = vmatpush.msra.mxu0 %v404
        %426 = vmatpush.msra.mxu0 %v403
        %427 = vmatpush.msra.mxu0 %v402
        %428 = vmatpush.msra.mxu0 %v401
        %429 = vmatmul.f32.gmra.mxu0 %v411
        %v430 = vpop.f32.mrf.mxu0
        %v431 = vadd.f32 %v407, %v430
        %432 = vdwg.mxu0
        %v433 = vmax.f32 %v431, 0.0
        %v434 = vld [vmem:[%s4] sm:$0xff]
        %v435 = vld [vmem:[%s4 + $0x8] sm:$0xff]
        %v436 = vld [vmem:[%s4 + $0x10] sm:$0xff]
        %v437 = vld [vmem:[%s4 + $0x18] sm:$0xff]
        %v438 = vld [vmem:[%s5] sm:$0x1]
        %v440 = vperm.slane %v438, 0
        %v443 = vsel %vm409, %v433, 0
        %445 = vmatpush.msra.mxu0 0.0
        %446 = vmatpush.msra.mxu0 0.0
        %447 = vmatpush.msra.mxu0 0.0
        %448 = vmatpush.msra.mxu0 0.0
        %449 = vmatpush.msra.mxu0 0.0
        %450 = vmatpush.msra.mxu0 0.0
        %451 = vmatpush.msra.mxu0 0.0
        %452 = vmatpush.msra.mxu0 0.0
        %453 = vmatpush.msra.mxu0 0.0
        %454 = vmatpush.msra.mxu0 0.0
        %455 = vmatpush.msra.mxu0 0.0
        %456 = vmatpush.msra.mxu0 0.0
        %457 = vmatpush.msra.mxu0 %v437
        %458 = vmatpush.msra.mxu0 %v436
        %459 = vmatpush.msra.mxu0 %v435
        %460 = vmatpush.msra.mxu0 %v434
        %461 = vmatmul.f32.gmra.mxu0 %v443
        %v462 = vpop.f32.mrf.mxu0
        %v463 = vadd.f32 %v440, %v462
        %464 = vdwg.mxu0
        %v465 = vmul.f32 %v399, %v463
        %v466 = vld [vmem:[%s7] sm:$0xff]
        %v467 = vld [vmem:[%s7 + $0x8] sm:$0xff]
        %v468 = vld [vmem:[%s7 + $0x10] sm:$0xff]
        %v469 = vld [vmem:[%s7 + $0x18] sm:$0xff]
        %v470 = vld [vmem:[%s6] sm:$0xff]
        %v471 = vld [vmem:[%s6 + $0x8] sm:$0xff]
        %v472 = vld [vmem:[%s6 + $0x10] sm:$0xff]
        %v473 = vld [vmem:[%s6 + $0x18] sm:$0xff]
        %474 = vmatpush.msra.mxu0 0.0
        %475 = vmatpush.msra.mxu0 0.0
        %476 = vmatpush.msra.mxu0 0.0
        %477 = vmatpush.msra.mxu0 0.0
        %478 = vmatpush.msra.mxu0 0.0
        %479 = vmatpush.msra.mxu0 0.0
        %480 = vmatpush.msra.mxu0 0.0
        %481 = vmatpush.msra.mxu0 0.0
        %482 = vmatpush.msra.mxu0 0.0
        %483 = vmatpush.msra.mxu0 0.0
        %484 = vmatpush.msra.mxu0 0.0
        %485 = vmatpush.msra.mxu0 0.0
        %486 = vmatpush.msra.mxu0 %v473
        %487 = vmatpush.msra.mxu0 %v472
        %488 = vmatpush.msra.mxu0 %v471
        %489 = vmatpush.msra.mxu0 %v470
        %490 = vmatmul.f32.gmra.mxu0 %v443
        %v491 = vpop.f32.mrf.mxu0
        %v492 = vadd.f32 0.0, %v491
        %493 = vdwg.mxu0
        %v495 = vsel %vm409, %v465, 0
        %497 = vmatpush.msra.mxu0 0.0
        %498 = vmatpush.msra.mxu0 0.0
        %499 = vmatpush.msra.mxu0 0.0
        %500 = vmatpush.msra.mxu0 0.0
        %501 = vmatpush.msra.mxu0 0.0
        %502 = vmatpush.msra.mxu0 0.0
        %503 = vmatpush.msra.mxu0 0.0
        %504 = vmatpush.msra.mxu0 0.0
        %505 = vmatpush.msra.mxu0 0.0
        %506 = vmatpush.msra.mxu0 0.0
        %507 = vmatpush.msra.mxu0 0.0
        %508 = vmatpush.msra.mxu0 0.0
        %509 = vmatpush.msra.mxu0 %v469
        %510 = vmatpush.msra.mxu0 %v468
        %511 = vmatpush.msra.mxu0 %v467
        %512 = vmatpush.msra.mxu0 %v466
        %513 = vmatmul.f32.gmra.mxu0 %v495
        %v514 = vpop.f32.mrf.mxu0
        %v515 = vadd.f32 %v492, %v514
        %516 = vdwg.mxu0
        %v517 = vld [vmem:[%s8] sm:$0x1]
        %v519 = vperm.slane %v517, 0
        %v521 = vadd.f32 %v515, %v519
        %v522 = vmax.f32 %v521, 0.0
        %v523 = vld [vmem:[%s9] sm:$0xff]
        %v524 = vld [vmem:[%s9 + $0x8] sm:$0xff]
        %v525 = vld [vmem:[%s10] sm:$0x1]
        %v527 = vperm.slane %v525, 0
        %vm529 = vcmask 130048
        %v531 = vsel %vm529, %v522, 0
        %533 = vmatpush.msra.mxu0 0.0
        %534 = vmatpush.msra.mxu0 0.0
        %535 = vmatpush.msra.mxu0 0.0
        %536 = vmatpush.msra.mxu0 0.0
        %537 = vmatpush.msra.mxu0 0.0
        %538 = vmatpush.msra.mxu0 0.0
        %539 = vmatpush.msra.mxu0 0.0
        %540 = vmatpush.msra.mxu0 0.0
        %541 = vmatpush.msra.mxu0 0.0
        %542 = vmatpush.msra.mxu0 0.0
        %543 = vmatpush.msra.mxu0 0.0
        %544 = vmatpush.msra.mxu0 0.0
        %545 = vmatpush.msra.mxu0 0.0
        %546 = vmatpush.msra.mxu0 0.0
        %547 = vmatpush.msra.mxu0 %v524
        %548 = vmatpush.msra.mxu0 %v523
        %549 = vmatmul.f32.gmra.mxu0 %v531
        %v550 = vpop.f32.mrf.mxu0
        %v551 = vadd.f32 %v527, %v550
        %552 = vdwg.mxu0
        %553 = vst.msk [vmem:[%s390] sm:$0xff] %vm529, %v551
        %s554 = sand.u32 %s274, 1
        %s555 = scalar_lea.sflag [#allocation3], %s554
        %s556 = sand.u32 %s274, 1
        %s557 = smul.addr %s556, 8
        %s558 = scalar_lea.vmem [#allocation2], %s557
        // Predicated region
        $region65: #{film_layer_forward.1} parent=63 // pred_check
          %p559 = pneg %p284
        $region66: #{film_layer_forward.1} parent=63 // pred_check_branch
          %561 = sbr.rel (%p559) target = $region68
        $region67: #{film_layer_forward.1} parent=63 // pred_region
          %563 = vsyncadd %s555, 0
          %s564 = smul.addr %s25, 8
          %s565 = scalar_lea.hbm %s11, %s564
          %s567 = sshll.u32 %s558, 4
          %s568 = int_to_ptr.vmem [resolvable:$true] %s567
          %s569 = sshll.u32 %s565, 4
          %s570 = int_to_ptr.hbm [resolvable:$true] %s569
          %572 = dma.vmem_to_hbm [thread:$0]  %s568, 128, %s570, %s555
        $region68: #{film_layer_forward.1} parent=63 // pred_fallthru
          _
      $region64: #{film_layer_forward.1} parent=5 // pred_fallthru
        _
      %p573 = scmp.le.s32.totalorder 2, %s20
      // Predicated region
      $region69: #{film_layer_forward.1} parent=5 // pred_check
        %p574 = pneg %p573
      $region70: #{film_layer_forward.1} parent=5 // pred_check_branch
        %576 = sbr.rel (%p574) target = $region72
      $region71: #{film_layer_forward.1} parent=5 // pred_region
        %s577 = ssub.s32 %s20, 2
        // Predicated region
        $region73: #{film_layer_forward.1} parent=71 // pred_check
          %p578 = pneg %p290
        $region74: #{film_layer_forward.1} parent=71 // pred_check_branch
          %580 = sbr.rel (%p578) target = $region76
        $region75: #{film_layer_forward.1} parent=71 // pred_region
          %s581 = sand.u32 %s275, 1
          %s582 = scalar_lea.sflag [#allocation3], %s581
          %s583 = sand.u32 %s275, 1
          %s584 = smul.addr %s583, 8
          %s585 = scalar_lea.vmem [#allocation2], %s584
          %587 = dma.done %s582, 128
        $region76: #{film_layer_forward.1} parent=71 // pred_fallthru
          _
      $region72: #{film_layer_forward.1} parent=5 // pred_fallthru
        _
    $region6: #{film_layer_forward.1} parent=1 // loop_footer
      %s24 = sadd.s32 1, %s20
    $region7: #{film_layer_forward.1} parent=1 // loop_footer_branch
      %19 = sbr.rel target = $region3
    $region8: #{film_layer_forward.1} parent=1 // loop_exit
      _
    %588 = vsyncpa [#allocation3], 1
    %s589 = scalar_lea.sflag [#allocation3], 1
    %590 = vsyncpa %s589, 1

</llo_original>
